<compile_context>
chip_gen: v5e
topology: v5e:2x2
jax: 0.10.0
libtpu: 0.0.40
codegen_flags: <defaults>
</compile_context>

<pallas_src>
import jax
import jax.numpy as jnp
from jax.experimental import pallas as pl
from jax.experimental.pallas import tpu as pltpu


def _round_up(n, m):
    return ((n + m - 1) // m) * m


def _cdiv(a, b):
    return (a + b - 1) // b


def _detr_head_kernel(x_ref, wc_ref, bc_ref, wb_ref, bb_ref,
                      logits_ref, boxes_ref):
    x = x_ref[...]                                         # (TM, H) compute dtype
    logits = jnp.dot(x, wc_ref[...],
                     preferred_element_type=jnp.float32) + bc_ref[...]
    boxes = jnp.dot(x, wb_ref[...],
                    preferred_element_type=jnp.float32) + bb_ref[...]
    logits_ref[...] = logits.astype(logits_ref.dtype)      # (TM, C)
    boxes_ref[...] = jax.nn.sigmoid(boxes).astype(boxes_ref.dtype)  # (TM, 4)


def prepare_params(w_cls, b_cls, w_box, b_box, *, compute_dtype=jnp.bfloat16):
    """Cast weights to the MXU compute dtype and reshape biases to (1, out) f32.
    Do this ONCE at parameter-setup time, not in the per-call path."""
    return (w_cls.astype(compute_dtype),
            b_cls.astype(jnp.float32).reshape(1, -1),
            w_box.astype(compute_dtype),
            b_box.astype(jnp.float32).reshape(1, -1))


def detr_head(x, w_cls, b_cls, w_box, b_box, *, tm=1024, out_dtype=jnp.float32):
    """x: (B, Q, H).  Weights are (H, out) (transpose of PyTorch's (out, in)),
    already in the desired compute dtype; biases are (1, out) float32 (see
    prepare_params).  Returns (logits (B, Q, C), boxes (B, Q, 4))."""
    B, Q, H = x.shape
    C = w_cls.shape[1]
    M = B * Q
    compute_dtype = w_cls.dtype

    x2 = x.reshape(M, H)
    if x2.dtype != compute_dtype:
        # One HBM pass; pass x already in `compute_dtype` to avoid it.
        x2 = x2.astype(compute_dtype)

    # Row tiling: pad only to a multiple of 8*ntiles (tiny); even tile count
    # when >1 so both TensorCores are used on v7x.
    M8 = _round_up(M, 8)
    ntiles = max(1, _cdiv(M8, tm))
    if ntiles > 1:
        ntiles = _round_up(ntiles, 2)
    TM = _round_up(_cdiv(M8, ntiles), 8)
    M_pad = ntiles * TM
    if M_pad != M:
        x2 = jnp.pad(x2, ((0, M_pad - M), (0, 0)))  # fuses with the cast under jit

    logits, boxes = pl.pallas_call(
        _detr_head_kernel,
        out_shape=(jax.ShapeDtypeStruct((M_pad, C), out_dtype),
                   jax.ShapeDtypeStruct((M_pad, 4), out_dtype)),
        grid=(ntiles,),
        in_specs=[
            pl.BlockSpec((TM, H), lambda i: (i, 0)),   # x row tile (double-buffered)
            pl.BlockSpec((H, C), lambda i: (0, 0)),    # class weight (VMEM resident)
            pl.BlockSpec((1, C), lambda i: (0, 0)),    # class bias   (VMEM resident)
            pl.BlockSpec((H, 4), lambda i: (0, 0)),    # box weight   (VMEM resident)
            pl.BlockSpec((1, 4), lambda i: (0, 0)),    # box bias     (VMEM resident)
        ],
        out_specs=(
            pl.BlockSpec((TM, C), lambda i: (i, 0)),
            pl.BlockSpec((TM, 4), lambda i: (i, 0)),
        ),
        compiler_params=pltpu.CompilerParams(
            dimension_semantics=("parallel",),         # megacore split on v7x
        ),
    )(x2, w_cls, b_cls, w_box, b_box)

    if M_pad != M:
        logits = logits[:M]
        boxes = boxes[:M]
    return logits.reshape(B, Q, C), boxes.reshape(B, Q, 4)


def init_params(key, hidden_dim, classes):
    """Deterministic synthetic init matching the nn.Linear shapes."""
    n_classes = classes + 1
    k1, k2, k3, k4 = jax.random.split(key, 4)
    bound = 1.0 / jnp.sqrt(hidden_dim)
    # stored as (H, out): the transpose of PyTorch's (out, in) weight
    w_box = jax.random.uniform(k1, (hidden_dim, 4), jnp.float32, -bound, bound)
    b_box = jax.random.uniform(k2, (4,), jnp.float32, -bound, bound)
    w_cls = jax.random.uniform(k3, (hidden_dim, n_classes), jnp.float32, -bound, bound)
    b_cls = jax.random.uniform(k4, (n_classes,), jnp.float32, -bound, bound)
    return w_cls, b_cls, w_box, b_box


if __name__ == "__main__":
    hidden_dim = 32
    classes = 1            # -> 2 class logits (classes + 1)
    B, Q = 2, 8            # batch, num object queries

    key = jax.random.PRNGKey(0)
    kx, kp = jax.random.split(key)
    x = jax.random.normal(kx, (B, Q, hidden_dim), dtype=jnp.float32)
    w_cls, b_cls, w_box, b_box = init_params(kp, hidden_dim, classes)

    # Pack / cast parameters once (bf16 weights, f32 biases).
    params = prepare_params(w_cls, b_cls, w_box, b_box)

    logits, boxes = detr_head(x, *params)
    jax.block_until_ready((logits, boxes))

    # Pure-JAX reference with the same bf16 rounding of x / weights, f32 math.
    f32 = jnp.float32
    xr = x.astype(jnp.bfloat16).astype(f32)
    wcr = w_cls.astype(jnp.bfloat16).astype(f32)
    wbr = w_box.astype(jnp.bfloat16).astype(f32)
    ref_logits = xr @ wcr + b_cls
    ref_boxes = jax.nn.sigmoid(xr @ wbr + b_box)

    assert logits.shape == (B, Q, classes + 1)
    assert boxes.shape == (B, Q, 4)
    assert jnp.allclose(logits, ref_logits, atol=1e-3, rtol=1e-3)
    assert jnp.allclose(boxes, ref_boxes, atol=1e-3, rtol=1e-3)

    print("KERNEL_OK")
</pallas_src>

<mosaic_0001>
module attributes {stable_mosaic.version = 11 : i64} {
  func.func @_detr_head_kernel(%arg0: i32, %arg1: memref<16x32xbf16, #tpu.memory_space<vmem>>, %arg2: memref<32x2xbf16, #tpu.memory_space<vmem>>, %arg3: memref<1x2xf32, #tpu.memory_space<vmem>>, %arg4: memref<32x4xbf16, #tpu.memory_space<vmem>>, %arg5: memref<1x4xf32, #tpu.memory_space<vmem>>, %arg6: memref<16x2xf32, #tpu.memory_space<vmem>>, %arg7: memref<16x4xf32, #tpu.memory_space<vmem>>) attributes {dimension_semantics = [#tpu.dimension_semantics<parallel>], iteration_bounds = array<i64: 1>, scalar_prefetch = 0 : i64, scratch_operands = 0 : i64, tpu.core_type = #tpu.core_type<tc>, window_params = [{transform_indices = @transform_0, window_bounds = array<i64: 16, 32>}, {pipeline_mode = #tpu.pipeline_mode<synchronous>, transform_indices = @transform_1, window_bounds = array<i64: 32, 2>}, {pipeline_mode = #tpu.pipeline_mode<synchronous>, transform_indices = @transform_2, window_bounds = array<i64: 1, 2>}, {pipeline_mode = #tpu.pipeline_mode<synchronous>, transform_indices = @transform_3, window_bounds = array<i64: 32, 4>}, {pipeline_mode = #tpu.pipeline_mode<synchronous>, transform_indices = @transform_4, window_bounds = array<i64: 1, 4>}, {transform_indices = @transform_5, window_bounds = array<i64: 16, 2>}, {transform_indices = @transform_6, window_bounds = array<i64: 16, 4>}]} {
    %c0 = arith.constant 0 : index
    %c0_0 = arith.constant 0 : index
    %0 = vector.load %arg1[%c0, %c0_0] : memref<16x32xbf16, #tpu.memory_space<vmem>>, vector<16x32xbf16>
    %c0_1 = arith.constant 0 : index
    %c0_2 = arith.constant 0 : index
    %1 = vector.load %arg2[%c0_1, %c0_2] : memref<32x2xbf16, #tpu.memory_space<vmem>>, vector<32x2xbf16>
    %cst = arith.constant dense<0.000000e+00> : vector<16x2xf32>
    %2 = tpu.matmul %0, %1, %cst {dimension_numbers = #tpu.dot_dimension_numbers<[1], [0], [0], [1], [0, 0, 1, 1], [], []>} : vector<16x32xbf16>, vector<32x2xbf16>, vector<16x2xf32> -> vector<16x2xf32>
    %c0_3 = arith.constant 0 : index
    %c0_4 = arith.constant 0 : index
    %3 = vector.load %arg3[%c0_3, %c0_4] : memref<1x2xf32, #tpu.memory_space<vmem>>, vector<1x2xf32>
    %4 = vector.broadcast %3 : vector<1x2xf32> to vector<16x2xf32>
    %5 = arith.addf %2, %4 : vector<16x2xf32>
    %c0_5 = arith.constant 0 : index
    %c0_6 = arith.constant 0 : index
    %6 = vector.load %arg4[%c0_5, %c0_6] : memref<32x4xbf16, #tpu.memory_space<vmem>>, vector<32x4xbf16>
    %cst_7 = arith.constant dense<0.000000e+00> : vector<16x4xf32>
    %7 = tpu.matmul %0, %6, %cst_7 {dimension_numbers = #tpu.dot_dimension_numbers<[1], [0], [0], [1], [0, 0, 1, 1], [], []>} : vector<16x32xbf16>, vector<32x4xbf16>, vector<16x4xf32> -> vector<16x4xf32>
    %c0_8 = arith.constant 0 : index
    %c0_9 = arith.constant 0 : index
    %8 = vector.load %arg5[%c0_8, %c0_9] : memref<1x4xf32, #tpu.memory_space<vmem>>, vector<1x4xf32>
    %9 = vector.broadcast %8 : vector<1x4xf32> to vector<16x4xf32>
    %10 = arith.addf %7, %9 : vector<16x4xf32>
    %c0_10 = arith.constant 0 : index
    %c0_11 = arith.constant 0 : index
    %11 = vector.load %arg6[%c0_10, %c0_11] : memref<16x2xf32, #tpu.memory_space<vmem>>, vector<16x2xf32>
    tpu.vector_store %arg6[%c0_10, %c0_11], %5 {strides = array<i32>} : memref<16x2xf32, #tpu.memory_space<vmem>>, vector<16x2xf32>,
    %12 = arith.negf %10 : vector<16x4xf32>
    %13 = math.exp %12 : vector<16x4xf32>
    %cst_12 = arith.constant 1.000000e+00 : f32
    %14 = vector.broadcast %cst_12 : f32 to vector<16x4xf32>
    %15 = arith.addf %14, %13 : vector<16x4xf32>
    %16 = arith.divf %14, %15 : vector<16x4xf32>
    %c0_13 = arith.constant 0 : index
    %c0_14 = arith.constant 0 : index
    %17 = vector.load %arg7[%c0_13, %c0_14] : memref<16x4xf32, #tpu.memory_space<vmem>>, vector<16x4xf32>
    tpu.vector_store %arg7[%c0_13, %c0_14], %16 {strides = array<i32>} : memref<16x4xf32, #tpu.memory_space<vmem>>, vector<16x4xf32>,
    return
  }
  func.func @transform_0(%arg0: i32) -> (i32, i32) {
    %c0_i32 = arith.constant 0 : i32
    %c0_i32_0 = arith.constant 0 : i32
    return %arg0, %c0_i32 : i32, i32
  }
  func.func @transform_1(%arg0: i32) -> (i32, i32) {
    %c0_i32 = arith.constant 0 : i32
    %c0_i32_0 = arith.constant 0 : i32
    %c0_i32_1 = arith.constant 0 : i32
    return %c0_i32, %c0_i32_0 : i32, i32
  }
  func.func @transform_2(%arg0: i32) -> (i32, i32) {
    %c0_i32 = arith.constant 0 : i32
    %c0_i32_0 = arith.constant 0 : i32
    %c0_i32_1 = arith.constant 0 : i32
    return %c0_i32, %c0_i32_0 : i32, i32
  }
  func.func @transform_3(%arg0: i32) -> (i32, i32) {
    %c0_i32 = arith.constant 0 : i32
    %c0_i32_0 = arith.constant 0 : i32
    %c0_i32_1 = arith.constant 0 : i32
    return %c0_i32, %c0_i32_0 : i32, i32
  }
  func.func @transform_4(%arg0: i32) -> (i32, i32) {
    %c0_i32 = arith.constant 0 : i32
    %c0_i32_0 = arith.constant 0 : i32
    %c0_i32_1 = arith.constant 0 : i32
    return %c0_i32, %c0_i32_0 : i32, i32
  }
  func.func @transform_5(%arg0: i32) -> (i32, i32) {
    %c0_i32 = arith.constant 0 : i32
    %c0_i32_0 = arith.constant 0 : i32
    return %arg0, %c0_i32 : i32, i32
  }
  func.func @transform_6(%arg0: i32) -> (i32, i32) {
    %c0_i32 = arith.constant 0 : i32
    %c0_i32_0 = arith.constant 0 : i32
    return %arg0, %c0_i32 : i32, i32
  }
}

</mosaic_0001>

<llo_original>
// kernel: tpu_custom_call.1
$region0: #{tpu_custom_call.1}
  #allocation0 [shape = 'u32[]', space=smem, size = 0x4, offset = 0x4, fixed_abs, tag = 'smem constant byte address 0x4 - core index']
  #allocation1 [shape = 'u32[72,128]{1,0:T(1,128)}', space=vmem, size = 0x9000, scoped, tag = 'internal scratch']
  %s0 = inlined_call_operand.vmem [shape: bf16[16,32], index: 0, kind: input, shape index: {}]
  %s1 = inlined_call_operand.vmem [shape: bf16[32,2], index: 1, kind: input, shape index: {}]
  %s2 = inlined_call_operand.vmem [shape: f32[1,2], index: 2, kind: input, shape index: {}]
  %s3 = inlined_call_operand.vmem [shape: bf16[32,4], index: 3, kind: input, shape index: {}]
  %s4 = inlined_call_operand.vmem [shape: f32[1,4], index: 4, kind: input, shape index: {}]
  %s5 = inlined_call_operand.vmem [shape: f32[16,2], index: 5, kind: output, shape index: {0}]
  %s6 = inlined_call_operand.vmem [shape: f32[16,4], index: 6, kind: output, shape index: {1}]
  %7 = xla_tuple %s5, %s6
  %s8 = sld [smem:[#allocation0]]
  $region38: #{tpu_custom_call.1} parent=0
    _
  %s10 = ssub.s32 1, %s8
  %s11 = scalar_select 0, %s10, %s8
  // Predicated region
  $region2: #{tpu_custom_call.1} parent=0 // pred_check
    _
  $region3: #{tpu_custom_call.1} parent=0 // pred_check_branch
    %13 = sbr.rel (0) target = $region5
  $region4: #{tpu_custom_call.1} parent=0 // pred_region
    _
  $region5: #{tpu_custom_call.1} parent=0 // pred_fallthru
    _
  // Predicated region
  $region6: #{tpu_custom_call.1} parent=0 // pred_check
    _
  $region7: #{tpu_custom_call.1} parent=0 // pred_check_branch
    %15 = sbr.rel (0) target = $region9
  $region8: #{tpu_custom_call.1} parent=0 // pred_region
    _
  $region9: #{tpu_custom_call.1} parent=0 // pred_fallthru
    _
  // Predicated region
  $region10: #{tpu_custom_call.1} parent=0 // pred_check
    _
  $region11: #{tpu_custom_call.1} parent=0 // pred_check_branch
    %17 = sbr.rel (0) target = $region13
  $region12: #{tpu_custom_call.1} parent=0 // pred_region
    _
  $region13: #{tpu_custom_call.1} parent=0 // pred_fallthru
    _
  // Predicated region
  $region14: #{tpu_custom_call.1} parent=0 // pred_check
    _
  $region15: #{tpu_custom_call.1} parent=0 // pred_check_branch
    %19 = sbr.rel (0) target = $region17
  $region16: #{tpu_custom_call.1} parent=0 // pred_region
    _
  $region17: #{tpu_custom_call.1} parent=0 // pred_fallthru
    _
  // Predicated region
  $region18: #{tpu_custom_call.1} parent=0 // pred_check
    _
  $region19: #{tpu_custom_call.1} parent=0 // pred_check_branch
    %21 = sbr.rel (0) target = $region21
  $region20: #{tpu_custom_call.1} parent=0 // pred_region
    _
  $region21: #{tpu_custom_call.1} parent=0 // pred_fallthru
    _
  %v23 = vld [vmem:[%s0] sm:$0xf]
  %v24 = vld [vmem:[%s0 + $0x4] sm:$0xf]
  %v25 = vld [vmem:[%s1] sm:$0xf]
  %v26 = vld [vmem:[%s1 + $0x4] sm:$0xf]
  %v27 = vld [vmem:[%s1 + $0x8] sm:$0xf]
  %v28 = vld [vmem:[%s1 + $0xc] sm:$0xf]
  %v29 = vld [vmem:[%s2] sm:$0x1]
  %v31 = vperm.slane %v29, 0
  %v35 = vunpack.c.l.b16 %v23
  %v36 = vunpack.c.l.b16 %v24
  %v37 = vpack.c.b16 %v36, %v35
  %v42 = vunpack.c.l.b16 %v25
  %v43 = vunpack.c.l.b16 %v26
  %v44 = vunpack.c.l.b16 %v27
  %v45 = vunpack.c.l.b16 %v28
  %v46 = vpack.c.b16 %v43, %v42
  %v47 = vpack.c.b16 %v45, %v44
  %vm50 = vcmask 261120
  %v52 = vsel %vm50, %v37, 0
  %54 = vmatpush.bf16.msra.mxu0 0
  %55 = vmatpush.bf16.msra.mxu0 0
  %56 = vmatpush.bf16.msra.mxu0 0
  %57 = vmatpush.bf16.msra.mxu0 0
  %58 = vmatpush.bf16.msra.mxu0 0
  %59 = vmatpush.bf16.msra.mxu0 0
  %60 = vmatpush.bf16.msra.mxu0 %v47
  %61 = vmatpush.bf16.msra.mxu0 %v46
  %62 = vmatmul.bf16.gmra.mxu0 %v52
  %v63 = vpop.f32.mrf.mxu0
  %v64 = vadd.f32 %v31, %v63
  %v65 = vpop.f32.mrf.mxu0
  %v66 = vadd.f32 %v31, %v65
  %67 = vdwg.mxu0
  %v68 = vld [vmem:[%s3] sm:$0xf]
  %v69 = vld [vmem:[%s3 + $0x4] sm:$0xf]
  %v70 = vld [vmem:[%s3 + $0x8] sm:$0xf]
  %v71 = vld [vmem:[%s3 + $0xc] sm:$0xf]
  %v72 = vld [vmem:[%s4] sm:$0x1]
  %v74 = vperm.slane %v72, 0
  %v80 = vunpack.c.l.b16 %v68
  %v81 = vunpack.c.l.b16 %v69
  %v82 = vunpack.c.l.b16 %v70
  %v83 = vunpack.c.l.b16 %v71
  %v84 = vpack.c.b16 %v81, %v80
  %v85 = vpack.c.b16 %v83, %v82
  %88 = vmatpush.bf16.msra.mxu0 0
  %89 = vmatpush.bf16.msra.mxu0 0
  %90 = vmatpush.bf16.msra.mxu0 0
  %91 = vmatpush.bf16.msra.mxu0 0
  %92 = vmatpush.bf16.msra.mxu0 0
  %93 = vmatpush.bf16.msra.mxu0 0
  %94 = vmatpush.bf16.msra.mxu0 %v85
  %95 = vmatpush.bf16.msra.mxu0 %v84
  %96 = vmatmul.bf16.gmra.mxu0 %v52
  %v97 = vpop.f32.mrf.mxu0
  %v98 = vadd.f32 %v74, %v97
  %v99 = vpop.f32.mrf.mxu0
  %v100 = vadd.f32 %v74, %v99
  %101 = vdwg.mxu0
  %vm102 = vcmask 15360
  %103 = vst.msk [vmem:[%s5] sm:$0xff] %vm102, %v64
  %104 = vst.msk [vmem:[%s5 + $0x8] sm:$0xff] %vm102, %v66
  %v105 = vxor.u32 %v98, 2147483648
  %v106 = vxor.u32 %v100, 2147483648
  %v107 = vmul.f32 %v105, 1.442695
  %v108 = vpow.pop %v107
  %v109 = vmul.f32 %v106, 1.442695
  %v110 = vpow.pop %v109
  %v111 = vadd.f32 %v108, 1.0
  %v112 = vadd.f32 %v110, 1.0
  %v113 = vrcp.pop %v111
  %v114 = vmul.f32 %v111, %v113
  %v115 = vsub.f32 1.0, %v114
  %v116 = vmul.f32 %v113, %v115
  %v117 = vadd.f32 %v113, %v116
  %vm118 = vweird.f32 %v111
  %vm119 = vweird.f32 %v113
  %vm120 = vmor %vm118, %vm119
  %v121 = vsel %vm120, %v113, %v117
  %v122 = vand.u32 2147483647, %v111
  %vm123 = vcmp.eq.f32.partialorder %v122, 8.507059e+37
  %v124 = vand.u32 %v111, 2147483648
  %v125 = vor.u32 1.1754944e-38, %v124
  %v126 = vsel %vm123, %v125, %v121
  %v127 = vmul.f32 1.0, %v126
  %v128 = vrcp.pop %v112
  %v129 = vmul.f32 %v112, %v128
  %v130 = vsub.f32 1.0, %v129
  %v131 = vmul.f32 %v128, %v130
  %v132 = vadd.f32 %v128, %v131
  %vm133 = vweird.f32 %v112
  %vm134 = vweird.f32 %v128
  %vm135 = vmor %vm133, %vm134
  %v136 = vsel %vm135, %v128, %v132
  %v137 = vand.u32 2147483647, %v112
  %vm138 = vcmp.eq.f32.partialorder %v137, 8.507059e+37
  %v139 = vand.u32 %v112, 2147483648
  %v140 = vor.u32 1.1754944e-38, %v139
  %v141 = vsel %vm138, %v140, %v136
  %v142 = vmul.f32 1.0, %v141
  %vm143 = vcmask 31744
  %144 = vst.msk [vmem:[%s6] sm:$0xff] %vm143, %v127
  %145 = vst.msk [vmem:[%s6 + $0x8] sm:$0xff] %vm143, %v142
  // Predicated region
  $region22: #{tpu_custom_call.1} parent=0 // pred_check
    _
  $region23: #{tpu_custom_call.1} parent=0 // pred_check_branch
    %147 = sbr.rel (0) target = $region25
  $region24: #{tpu_custom_call.1} parent=0 // pred_region
    _
  $region25: #{tpu_custom_call.1} parent=0 // pred_fallthru
    _
  // Predicated region
  $region26: #{tpu_custom_call.1} parent=0 // pred_check
    _
  $region27: #{tpu_custom_call.1} parent=0 // pred_check_branch
    %149 = sbr.rel (0) target = $region29
  $region28: #{tpu_custom_call.1} parent=0 // pred_region
    _
  $region29: #{tpu_custom_call.1} parent=0 // pred_fallthru
    _
  // Predicated region
  $region30: #{tpu_custom_call.1} parent=0 // pred_check
    _
  $region31: #{tpu_custom_call.1} parent=0 // pred_check_branch
    %151 = sbr.rel (0) target = $region33
  $region32: #{tpu_custom_call.1} parent=0 // pred_region
    _
  $region33: #{tpu_custom_call.1} parent=0 // pred_fallthru
    _
  // Predicated region
  $region34: #{tpu_custom_call.1} parent=0 // pred_check
    _
  $region35: #{tpu_custom_call.1} parent=0 // pred_check_branch
    %153 = sbr.rel (0) target = $region37
  $region36: #{tpu_custom_call.1} parent=0 // pred_region
    _
  $region37: #{tpu_custom_call.1} parent=0 // pred_fallthru
    _

</llo_original>
